<compile_context>
chip_gen: v5e
topology: v5e:2x2
jax: 0.10.0
libtpu: 0.0.40
codegen_flags: <defaults>
</compile_context>

<pallas_src>
from functools import partial

import jax
import jax.numpy as jnp
from jax.experimental import pallas as pl
from jax.experimental.pallas import tpu as pltpu


# ----------------------------------------------------------------------------
# Pallas kernel: fused linear projection + (class/bias/positional) add.
# ----------------------------------------------------------------------------
def _embed_kernel(x_ref, w_ref, bp_ref, o_ref):
    # x_ref : (TM, Din) f32 — per-token input rows; the class-token row of each
    #         frame is all-zero, so its dot contribution is 0 and the fused
    #         bias slab supplies (class_token + pos[0]) for it.
    # w_ref : (Din, L)  f32 — projection weight with rows permuted from the
    #         einops (p1 p2 c) order to (c p1 p2); grid-invariant (fetched once).
    # bp_ref: (TM, L)   f32 — fused [class_token+pos0 ; bias+pos[1:]] per frame,
    #         tiled to the row tile; grid-invariant.
    # o_ref : (TM, L)   f32 — token rows; L % 128 == 0 so the store is a
    #         lane-dense, unmasked full-tile store.
    acc = jnp.dot(x_ref[...], w_ref[...], preferred_element_type=jnp.float32)
    o_ref[...] = (acc + bp_ref[...]).astype(o_ref.dtype)


# ----------------------------------------------------------------------------
# Generation-aware tiling helpers.
# ----------------------------------------------------------------------------
def _num_tensorcores() -> int:
    """2 for dual-TensorCore chips (v7x, megacore v4/v5p), else 1 (v5e/v6e)."""
    try:
        kind = jax.devices()[0].device_kind.lower()
    except Exception:
        return 1
    if "lite" in kind or "v5e" in kind or "v6e" in kind:
        return 1
    if "v7" in kind or "v4" in kind or "v5p" in kind:
        return 2
    return 1


def _choose_frames_per_tile(BT, rows_per_frame, num_tc,
                            target_rows=2048, min_rows_per_tile=256):
    """Frames-per-tile f with f | BT and (f*rows_per_frame) sublane-legal.

    1-TC chips (v5e/v6e): single largest tile up to target_rows (grid is a
    sequential loop there; extra steps are pure per-step overhead).
    2-TC chips (v7x/megacore): even tile count, each tile >= min_rows_per_tile
    rows of real work, otherwise fall back to the single-tile choice.
    """
    divisors = [f for f in range(1, BT + 1) if BT % f == 0]
    legal = [f for f in divisors if (f * rows_per_frame) % 8 == 0 or f == BT]
    if num_tc >= 2:
        cand = [f for f in legal
                if f != BT
                and (BT // f) % num_tc == 0
                and min_rows_per_tile <= f * rows_per_frame <= target_rows]
        if cand:
            return max(cand)
    cand = [f for f in legal if f * rows_per_frame <= target_rows]
    if cand:
        return max(cand)
    return min(legal)


# ----------------------------------------------------------------------------
# Exact-f32 XLA embedding (reference and small/odd-config fallback).
# Follows the einops 'b c (h p1) (w p2) -> b (h w) (p1 p2 c)' order exactly.
# ----------------------------------------------------------------------------
def _embedding_xla(x, w, b, class_token, pos_embedding, patch_size):
    B, T, C, H, W = x.shape
    BT = B * T
    p = patch_size
    hp, wp = H // p, W // p
    P = hp * wp
    Din = p * p * C
    L = w.shape[0]
    xf = x.reshape(BT, C, hp, p, wp, p)
    xf = jnp.transpose(xf, (0, 2, 4, 3, 5, 1)).reshape(BT, P, Din)   # (p1 p2 c)
    tok = jnp.einsum("bpd,ld->bpl", xf, w,
                     precision=jax.lax.Precision.HIGHEST) + b[None, None, :]
    cls = jnp.broadcast_to(class_token.reshape(1, 1, L), (BT, 1, L))
    tok = jnp.concatenate([cls, tok], axis=1)
    return tok + pos_embedding.reshape(1, P + 1, L)


# ----------------------------------------------------------------------------
# Wrapper: builds the flat token-row problem and calls the Pallas kernel.
# ----------------------------------------------------------------------------
def vit_patch_embedding(x, w, b, class_token, pos_embedding, patch_size,
                        *, min_pallas_rows=512, target_rows=2048):
    """x: (B, T, C, H, W) f32. Returns tokens (B*T, num_patches+1, latent) f32.

    Matches InputEmbedding2_Batched.forward (f32 semantics)."""
    B, T, C, H, W = x.shape
    if H != W or H % patch_size != 0:
        raise ValueError("img_size must be divisible by patch_size")
    BT = B * T
    p = patch_size
    hp, wp = H // p, W // p
    P = hp * wp
    Din = p * p * C
    L = w.shape[0]                 # torch Linear weight is (L, Din)
    rows_per_frame = P + 1         # class token + P patches per frame
    M = BT * rows_per_frame        # total token rows

    if (L % 128 != 0) or (M < min_pallas_rows):
        # TODO(synk): lane-dense packing for latent % 128 != 0 not implemented;
        # tiny problems are cheaper as one fused XLA dot than a pallas_call.
        return _embedding_xla(x, w, b, class_token, pos_embedding, patch_size)

    # ---- glue: channel-first patch layout (b h w c p1 p2) -------------------
    # The einops (p1 p2 c) permutation is folded into the weight rows below, so
    # this keeps W/p2 innermost (lane-friendly) and needs no extra transpose.
    xf = x.reshape(BT, C, hp, p, wp, p)
    xf = jnp.transpose(xf, (0, 2, 4, 1, 3, 5))             # (BT, hp, wp, C, p1, p2)
    patches = xf.reshape(BT, P, Din).astype(jnp.float32)
    # One all-zero leading row per frame == the class-token row (its value comes
    # purely from the fused bias slab). Pad is on the narrow Din side and fuses
    # into the transpose materialization above.
    lhs = jnp.pad(patches, ((0, 0), (1, 0), (0, 0))).reshape(M, Din)

    # ---- one-time weight row permutation: (p1 p2 c) -> (c p1 p2) -------------
    w_t = jnp.transpose(w).reshape(p, p, C, L).transpose(2, 0, 1, 3).reshape(Din, L)
    w_t = w_t.astype(jnp.float32)

    # ---- fused bias slab: row 0 = class_token + pos[0], rows 1..P = b + pos --
    pos = pos_embedding.reshape(P + 1, L).astype(jnp.float32)
    cls_row = class_token.reshape(1, L).astype(jnp.float32) + pos[0:1, :]
    bias_slab = jnp.concatenate(
        [cls_row, b.reshape(1, L).astype(jnp.float32) + pos[1:, :]], axis=0)  # (P+1, L)

    # ---- tiling ---------------------------------------------------------------
    num_tc = _num_tensorcores()
    f = _choose_frames_per_tile(BT, rows_per_frame, num_tc, target_rows=target_rows)
    TM = f * rows_per_frame
    grid = (M // TM,)
    bias_tile = jnp.tile(bias_slab, (f, 1))                 # (TM, L), resident

    out2d = pl.pallas_call(
        _embed_kernel,
        out_shape=jax.ShapeDtypeStruct((M, L), jnp.float32),
        grid_spec=pltpu.PrefetchScalarGridSpec(
            num_scalar_prefetch=0,
            grid=grid,
            in_specs=[
                pl.BlockSpec((TM, Din), lambda i: (i, 0)),   # token rows (tiled M)
                pl.BlockSpec((Din, L), lambda i: (0, 0)),    # weight: resident
                pl.BlockSpec((TM, L), lambda i: (0, 0)),     # bias+pos: resident
            ],
            out_specs=pl.BlockSpec((TM, L), lambda i: (i, 0)),
        ),
        compiler_params=pltpu.CompilerParams(
            dimension_semantics=("parallel",),   # shards tiles over v7x's 2 TCs
        ),
    )(lhs, w_t, bias_tile)

    # Pure reshape — the class rows were written by the kernel, so there is no
    # concatenate (no extra HBM pass) here.
    return out2d.reshape(BT, P + 1, L)


# ----------------------------------------------------------------------------
# Rest of the module forward (plain JAX), faithful to the PyTorch semantics —
# including nn.MultiheadAttention's batch_first=False convention: the module
# feeds (B*T, num_patches+1, E), so torch attends over axis 0 (the B*T axis)
# with axis 1 as the batch axis. Reproduced exactly.
# ----------------------------------------------------------------------------
def _layer_norm(x, gamma, beta, eps=1e-5):
    mu = jnp.mean(x, axis=-1, keepdims=True)
    var = jnp.var(x, axis=-1, keepdims=True)
    return (x - mu) / jnp.sqrt(var + eps) * gamma + beta


def _multihead_attention(x, p, num_heads):
    S, N, E = x.shape
    Dh = E // num_heads
    qkv = x @ p["in_w"].T + p["in_b"]                    # (S, N, 3E)
    q, k, v = jnp.split(qkv, 3, axis=-1)
    q = q.reshape(S, N, num_heads, Dh)
    k = k.reshape(S, N, num_heads, Dh)
    v = v.reshape(S, N, num_heads, Dh)
    scores = jnp.einsum("qnhd,knhd->nhqk", q, k) / jnp.sqrt(jnp.float32(Dh))
    attn = jax.nn.softmax(scores, axis=-1)
    out = jnp.einsum("nhqk,knhd->qnhd", attn, v).reshape(S, N, E)
    return out @ p["out_w"].T + p["out_b"]


def _encoder_block(x, p, num_heads):
    attn = _multihead_attention(x, p["attn"], num_heads)
    x = _layer_norm(x + attn, p["ln1_g"], p["ln1_b"])
    h = jax.nn.relu(x @ p["ffn_w1"].T + p["ffn_b1"]) @ p["ffn_w2"].T + p["ffn_b2"]
    return _layer_norm(x + h, p["ln2_g"], p["ln2_b"])


def vit_forward(x, params, patch_size, num_heads=8):
    B, T = x.shape[0], x.shape[1]
    tokens = vit_patch_embedding(
        x, params["proj_w"], params["proj_b"],
        params["class_token"], params["pos_embedding"], patch_size)
    y = tokens                                            # (B*T, P+1, E)
    for lp in params["encoders"]:
        y = _encoder_block(y, lp, num_heads)
    P1, E = y.shape[1], y.shape[2]
    y = y.reshape(B, T, P1, E)
    last = y[:, -1]                                       # (B, P+1, E)
    cls_last, patch_last = last[:, 0, :], last[:, 1:, :]
    vh, ph = params["value_head"], params["policy_head"]
    value = jnp.tanh(_layer_norm(cls_last, vh["ln_g"], vh["ln_b"]) @ vh["w"].T + vh["b"])
    policy = (_layer_norm(patch_last, ph["ln_g"], ph["ln_b"]) @ ph["w"].T + ph["b"]).squeeze(-1)
    return policy, value                                  # (B, P), (B, 1)


if __name__ == "__main__":
    # Small config consistent with the module (patch_size=1 keeps the class-level
    # num_patches == game_size**2 consistent with the embedding); latent is a
    # multiple of 128 — like the module's default 768 — so token rows are
    # naturally lane-dense.
    batch = 2
    num_history = 3
    seq = num_history + 1            # 4
    n_channels = 4
    game_size = 9                    # small Go board
    patch_size = 1
    latent_size = 128                # divisible by num_heads=8 and by 128
    num_heads = 8
    n_layers = 2

    P = (game_size // patch_size) ** 2          # 81 patches per frame
    Din = patch_size * patch_size * n_channels  # 4

    # Guarantee the Pallas path (not the small-M / odd-latent fallback) runs.
    assert latent_size % 128 == 0
    assert batch * seq * (P + 1) >= 512

    key = jax.random.PRNGKey(0)
    keys = iter(jax.random.split(key, 64))

    x = jax.random.normal(next(keys),
                          (batch, seq, n_channels, game_size, game_size),
                          dtype=jnp.float32)

    params = {
        "proj_w": jax.random.normal(next(keys), (latent_size, Din), jnp.float32) * 0.02,
        "proj_b": jax.random.normal(next(keys), (latent_size,), jnp.float32) * 0.02,
        "class_token": jax.random.normal(next(keys), (1, 1, latent_size), jnp.float32),
        "pos_embedding": jax.random.normal(next(keys), (1, P + 1, latent_size), jnp.float32),
        "encoders": [],
        "value_head": {
            "ln_g": jnp.ones((latent_size,), jnp.float32),
            "ln_b": jnp.zeros((latent_size,), jnp.float32),
            "w": jax.random.normal(next(keys), (1, latent_size), jnp.float32) * 0.05,
            "b": jnp.zeros((1,), jnp.float32),
        },
        "policy_head": {
            "ln_g": jnp.ones((latent_size,), jnp.float32),
            "ln_b": jnp.zeros((latent_size,), jnp.float32),
            "w": jax.random.normal(next(keys), (1, latent_size), jnp.float32) * 0.05,
            "b": jnp.zeros((1,), jnp.float32),
        },
    }
    for _ in range(n_layers):
        params["encoders"].append({
            "attn": {
                "in_w": jax.random.normal(next(keys), (3 * latent_size, latent_size), jnp.float32) * 0.05,
                "in_b": jnp.zeros((3 * latent_size,), jnp.float32),
                "out_w": jax.random.normal(next(keys), (latent_size, latent_size), jnp.float32) * 0.05,
                "out_b": jnp.zeros((latent_size,), jnp.float32),
            },
            "ln1_g": jnp.ones((latent_size,), jnp.float32),
            "ln1_b": jnp.zeros((latent_size,), jnp.float32),
            "ffn_w1": jax.random.normal(next(keys), (latent_size, latent_size), jnp.float32) * 0.05,
            "ffn_b1": jnp.zeros((latent_size,), jnp.float32),
            "ffn_w2": jax.random.normal(next(keys), (latent_size, latent_size), jnp.float32) * 0.05,
            "ffn_b2": jnp.zeros((latent_size,), jnp.float32),
            "ln2_g": jnp.ones((latent_size,), jnp.float32),
            "ln2_b": jnp.zeros((latent_size,), jnp.float32),
        })

    embed_fn = jax.jit(partial(vit_patch_embedding, patch_size=patch_size))
    forward_fn = jax.jit(partial(vit_forward, patch_size=patch_size, num_heads=num_heads))

    # --- 1. Pallas embedding kernel vs. exact-f32 XLA reference --------------
    emb = jax.block_until_ready(
        embed_fn(x, params["proj_w"], params["proj_b"],
                 params["class_token"], params["pos_embedding"]))
    ref = _embedding_xla(x, params["proj_w"], params["proj_b"],
                         params["class_token"], params["pos_embedding"], patch_size)
    assert emb.shape == (batch * seq, P + 1, latent_size), emb.shape
    # f32 operands in-kernel; tolerance only covers the MXU's default f32-matmul
    # precision (no input rounding) — tighter than the previous bf16 version.
    assert bool(jnp.allclose(emb, ref, atol=1e-2, rtol=1e-2)), "embedding mismatch"

    # --- 2. Full module forward (Pallas embedding + plain-JAX encoder/heads) -
    policy_logits, value = forward_fn(x, params)
    policy_logits = jax.block_until_ready(policy_logits)
    value = jax.block_until_ready(value)
    assert policy_logits.shape == (batch, P), policy_logits.shape
    assert value.shape == (batch, 1), value.shape
    assert bool(jnp.all(jnp.isfinite(policy_logits))) and bool(jnp.all(jnp.isfinite(value)))

    print("KERNEL_OK")
</pallas_src>

<mosaic_0001>
module attributes {stable_mosaic.version = 11 : i64} {
  func.func @_embed_kernel(%arg0: i32, %arg1: memref<656x4xf32, #tpu.memory_space<vmem>>, %arg2: memref<4x128xf32, #tpu.memory_space<vmem>>, %arg3: memref<656x128xf32, #tpu.memory_space<vmem>>, %arg4: memref<656x128xf32, #tpu.memory_space<vmem>>) attributes {dimension_semantics = [#tpu.dimension_semantics<parallel>], iteration_bounds = array<i64: 1>, scalar_prefetch = 0 : i64, scratch_operands = 0 : i64, tpu.core_type = #tpu.core_type<tc>, window_params = [{transform_indices = @transform_0, window_bounds = array<i64: 656, 4>}, {pipeline_mode = #tpu.pipeline_mode<synchronous>, transform_indices = @transform_1, window_bounds = array<i64: 4, 128>}, {pipeline_mode = #tpu.pipeline_mode<synchronous>, transform_indices = @transform_2, window_bounds = array<i64: 656, 128>}, {transform_indices = @transform_3, window_bounds = array<i64: 656, 128>}]} {
    %c0 = arith.constant 0 : index
    %c0_0 = arith.constant 0 : index
    %0 = vector.load %arg1[%c0, %c0_0] : memref<656x4xf32, #tpu.memory_space<vmem>>, vector<656x4xf32>
    %c0_1 = arith.constant 0 : index
    %c0_2 = arith.constant 0 : index
    %1 = vector.load %arg2[%c0_1, %c0_2] : memref<4x128xf32, #tpu.memory_space<vmem>>, vector<4x128xf32>
    %cst = arith.constant dense<0.000000e+00> : vector<656x128xf32>
    %2 = tpu.matmul %0, %1, %cst {dimension_numbers = #tpu.dot_dimension_numbers<[1], [0], [0], [1], [0, 0, 1, 1], [], []>} : vector<656x4xf32>, vector<4x128xf32>, vector<656x128xf32> -> vector<656x128xf32>
    %c0_3 = arith.constant 0 : index
    %c0_4 = arith.constant 0 : index
    %3 = vector.load %arg3[%c0_3, %c0_4] : memref<656x128xf32, #tpu.memory_space<vmem>>, vector<656x128xf32>
    %4 = arith.addf %2, %3 : vector<656x128xf32>
    %c0_5 = arith.constant 0 : index
    %c0_6 = arith.constant 0 : index
    %5 = vector.load %arg4[%c0_5, %c0_6] : memref<656x128xf32, #tpu.memory_space<vmem>>, vector<656x128xf32>
    tpu.vector_store %arg4[%c0_5, %c0_6], %4 {strides = array<i32>} : memref<656x128xf32, #tpu.memory_space<vmem>>, vector<656x128xf32>,
    return
  }
  func.func @transform_0(%arg0: i32) -> (i32, i32) {
    %c0_i32 = arith.constant 0 : i32
    %c0_i32_0 = arith.constant 0 : i32
    return %arg0, %c0_i32 : i32, i32
  }
  func.func @transform_1(%arg0: i32) -> (i32, i32) {
    %c0_i32 = arith.constant 0 : i32
    %c0_i32_0 = arith.constant 0 : i32
    %c0_i32_1 = arith.constant 0 : i32
    return %c0_i32, %c0_i32_0 : i32, i32
  }
  func.func @transform_2(%arg0: i32) -> (i32, i32) {
    %c0_i32 = arith.constant 0 : i32
    %c0_i32_0 = arith.constant 0 : i32
    %c0_i32_1 = arith.constant 0 : i32
    return %c0_i32, %c0_i32_0 : i32, i32
  }
  func.func @transform_3(%arg0: i32) -> (i32, i32) {
    %c0_i32 = arith.constant 0 : i32
    %c0_i32_0 = arith.constant 0 : i32
    return %arg0, %c0_i32 : i32, i32
  }
}

</mosaic_0001>

<llo_original>
// kernel: tile.9
$region0: #{tile.9}
  %s0 = inlined_call_operand.vmem [shape: f32[8,82,128], index: 0, kind: input, shape index: {}]
  %s1 = inlined_call_operand.vmem [shape: f32[656,128], index: 1, kind: output, shape index: {}]
  %v2 = vld [vmem:[%s0] sm:$0xff]
  %3 = vst [vmem:[%s1] sm:$0xff] %v2
  %s4 = scalar_lea.vmem %s0, 8
  %v5 = vld [vmem:[%s4] sm:$0xff]
  %s6 = scalar_lea.vmem %s1, 8
  %7 = vst [vmem:[%s6] sm:$0xff] %v5
  %s8 = scalar_lea.vmem %s0, 16
  %v9 = vld [vmem:[%s8] sm:$0xff]
  %s10 = scalar_lea.vmem %s1, 16
  %11 = vst [vmem:[%s10] sm:$0xff] %v9
  %s12 = scalar_lea.vmem %s0, 24
  %v13 = vld [vmem:[%s12] sm:$0xff]
  %s14 = scalar_lea.vmem %s1, 24
  %15 = vst [vmem:[%s14] sm:$0xff] %v13
  %s16 = scalar_lea.vmem %s0, 32
  %v17 = vld [vmem:[%s16] sm:$0xff]
  %s18 = scalar_lea.vmem %s1, 32
  %19 = vst [vmem:[%s18] sm:$0xff] %v17
  %s20 = scalar_lea.vmem %s0, 40
  %v21 = vld [vmem:[%s20] sm:$0xff]
  %s22 = scalar_lea.vmem %s1, 40
  %23 = vst [vmem:[%s22] sm:$0xff] %v21
  %s24 = scalar_lea.vmem %s0, 48
  %v25 = vld [vmem:[%s24] sm:$0xff]
  %s26 = scalar_lea.vmem %s1, 48
  %27 = vst [vmem:[%s26] sm:$0xff] %v25
  %s28 = scalar_lea.vmem %s0, 56
  %v29 = vld [vmem:[%s28] sm:$0xff]
  %s30 = scalar_lea.vmem %s1, 56
  %31 = vst [vmem:[%s30] sm:$0xff] %v29
  %s32 = scalar_lea.vmem %s0, 64
  %v33 = vld [vmem:[%s32] sm:$0xff]
  %s34 = scalar_lea.vmem %s1, 64
  %35 = vst [vmem:[%s34] sm:$0xff] %v33
  %s36 = scalar_lea.vmem %s0, 72
  %v37 = vld [vmem:[%s36] sm:$0xff]
  %s38 = scalar_lea.vmem %s1, 72
  %39 = vst [vmem:[%s38] sm:$0xff] %v37
  %s40 = scalar_lea.vmem %s0, 80
  %v41 = vld [vmem:[%s40] sm:$0x3]
  %s42 = scalar_lea.vmem %s1, 80
  %43 = vst [vmem:[%s42] sm:$0x3] %v41
  %s44 = scalar_lea.vmem %s0, 88
  %v45 = vld [vmem:[%s44] sm:$0xff]
  %s46 = scalar_lea.vmem %s1, 82
  %47 = vst [vmem:[%s46] sm:$0xff] %v45
  %s48 = scalar_lea.vmem %s0, 96
  %v49 = vld [vmem:[%s48] sm:$0xff]
  %s50 = scalar_lea.vmem %s1, 90
  %51 = vst [vmem:[%s50] sm:$0xff] %v49
  %s52 = scalar_lea.vmem %s0, 104
  %v53 = vld [vmem:[%s52] sm:$0xff]
  %s54 = scalar_lea.vmem %s1, 98
  %55 = vst [vmem:[%s54] sm:$0xff] %v53
  %s56 = scalar_lea.vmem %s0, 112
  %v57 = vld [vmem:[%s56] sm:$0xff]
  %s58 = scalar_lea.vmem %s1, 106
  %59 = vst [vmem:[%s58] sm:$0xff] %v57
  %s60 = scalar_lea.vmem %s0, 120
  %v61 = vld [vmem:[%s60] sm:$0xff]
  %s62 = scalar_lea.vmem %s1, 114
  %63 = vst [vmem:[%s62] sm:$0xff] %v61
  %s64 = scalar_lea.vmem %s0, 128
  %v65 = vld [vmem:[%s64] sm:$0xff]
  %s66 = scalar_lea.vmem %s1, 122
  %67 = vst [vmem:[%s66] sm:$0xff] %v65
  %s68 = scalar_lea.vmem %s0, 136
  %v69 = vld [vmem:[%s68] sm:$0xff]
  %s70 = scalar_lea.vmem %s1, 130
  %71 = vst [vmem:[%s70] sm:$0xff] %v69
  %s72 = scalar_lea.vmem %s0, 144
  %v73 = vld [vmem:[%s72] sm:$0xff]
  %s74 = scalar_lea.vmem %s1, 138
  %75 = vst [vmem:[%s74] sm:$0xff] %v73
  %s76 = scalar_lea.vmem %s0, 152
  %v77 = vld [vmem:[%s76] sm:$0xff]
  %s78 = scalar_lea.vmem %s1, 146
  %79 = vst [vmem:[%s78] sm:$0xff] %v77
  %s80 = scalar_lea.vmem %s0, 160
  %v81 = vld [vmem:[%s80] sm:$0xff]
  %s82 = scalar_lea.vmem %s1, 154
  %83 = vst [vmem:[%s82] sm:$0xff] %v81
  %s84 = scalar_lea.vmem %s0, 168
  %v85 = vld [vmem:[%s84] sm:$0x3]
  %s86 = scalar_lea.vmem %s1, 162
  %87 = vst [vmem:[%s86] sm:$0x3] %v85
  %s88 = scalar_lea.vmem %s0, 176
  %v89 = vld [vmem:[%s88] sm:$0xff]
  %s90 = scalar_lea.vmem %s1, 164
  %91 = vst [vmem:[%s90] sm:$0xff] %v89
  %s92 = scalar_lea.vmem %s0, 184
  %v93 = vld [vmem:[%s92] sm:$0xff]
  %s94 = scalar_lea.vmem %s1, 172
  %95 = vst [vmem:[%s94] sm:$0xff] %v93
  %s96 = scalar_lea.vmem %s0, 192
  %v97 = vld [vmem:[%s96] sm:$0xff]
  %s98 = scalar_lea.vmem %s1, 180
  %99 = vst [vmem:[%s98] sm:$0xff] %v97
  %s100 = scalar_lea.vmem %s0, 200
  %v101 = vld [vmem:[%s100] sm:$0xff]
  %s102 = scalar_lea.vmem %s1, 188
  %103 = vst [vmem:[%s102] sm:$0xff] %v101
  %s104 = scalar_lea.vmem %s0, 208
  %v105 = vld [vmem:[%s104] sm:$0xff]
  %s106 = scalar_lea.vmem %s1, 196
  %107 = vst [vmem:[%s106] sm:$0xff] %v105
  %s108 = scalar_lea.vmem %s0, 216
  %v109 = vld [vmem:[%s108] sm:$0xff]
  %s110 = scalar_lea.vmem %s1, 204
  %111 = vst [vmem:[%s110] sm:$0xff] %v109
  %s112 = scalar_lea.vmem %s0, 224
  %v113 = vld [vmem:[%s112] sm:$0xff]
  %s114 = scalar_lea.vmem %s1, 212
  %115 = vst [vmem:[%s114] sm:$0xff] %v113
  %s116 = scalar_lea.vmem %s0, 232
  %v117 = vld [vmem:[%s116] sm:$0xff]
  %s118 = scalar_lea.vmem %s1, 220
  %119 = vst [vmem:[%s118] sm:$0xff] %v117
  %s120 = scalar_lea.vmem %s0, 240
  %v121 = vld [vmem:[%s120] sm:$0xff]
  %s122 = scalar_lea.vmem %s1, 228
  %123 = vst [vmem:[%s122] sm:$0xff] %v121
  %s124 = scalar_lea.vmem %s0, 248
  %v125 = vld [vmem:[%s124] sm:$0xff]
  %s126 = scalar_lea.vmem %s1, 236
  %127 = vst [vmem:[%s126] sm:$0xff] %v125
  %s128 = scalar_lea.vmem %s0, 256
  %v129 = vld [vmem:[%s128] sm:$0x3]
  %s130 = scalar_lea.vmem %s1, 244
  %131 = vst [vmem:[%s130] sm:$0x3] %v129
  %s132 = scalar_lea.vmem %s0, 264
  %v133 = vld [vmem:[%s132] sm:$0xff]
  %s134 = scalar_lea.vmem %s1, 246
  %135 = vst [vmem:[%s134] sm:$0xff] %v133
  %s136 = scalar_lea.vmem %s0, 272
  %v137 = vld [vmem:[%s136] sm:$0xff]
  %s138 = scalar_lea.vmem %s1, 254
  %139 = vst [vmem:[%s138] sm:$0xff] %v137
  %s140 = scalar_lea.vmem %s0, 280
  %v141 = vld [vmem:[%s140] sm:$0xff]
  %s142 = scalar_lea.vmem %s1, 262
  %143 = vst [vmem:[%s142] sm:$0xff] %v141
  %s144 = scalar_lea.vmem %s0, 288
  %v145 = vld [vmem:[%s144] sm:$0xff]
  %s146 = scalar_lea.vmem %s1, 270
  %147 = vst [vmem:[%s146] sm:$0xff] %v145
  %s148 = scalar_lea.vmem %s0, 296
  %v149 = vld [vmem:[%s148] sm:$0xff]
  %s150 = scalar_lea.vmem %s1, 278
  %151 = vst [vmem:[%s150] sm:$0xff] %v149
  %s152 = scalar_lea.vmem %s0, 304
  %v153 = vld [vmem:[%s152] sm:$0xff]
  %s154 = scalar_lea.vmem %s1, 286
  %155 = vst [vmem:[%s154] sm:$0xff] %v153
  %s156 = scalar_lea.vmem %s0, 312
  %v157 = vld [vmem:[%s156] sm:$0xff]
  %s158 = scalar_lea.vmem %s1, 294
  %159 = vst [vmem:[%s158] sm:$0xff] %v157
  %s160 = scalar_lea.vmem %s0, 320
  %v161 = vld [vmem:[%s160] sm:$0xff]
  %s162 = scalar_lea.vmem %s1, 302
  %163 = vst [vmem:[%s162] sm:$0xff] %v161
  %s164 = scalar_lea.vmem %s0, 328
  %v165 = vld [vmem:[%s164] sm:$0xff]
  %s166 = scalar_lea.vmem %s1, 310
  %167 = vst [vmem:[%s166] sm:$0xff] %v165
  %s168 = scalar_lea.vmem %s0, 336
  %v169 = vld [vmem:[%s168] sm:$0xff]
  %s170 = scalar_lea.vmem %s1, 318
  %171 = vst [vmem:[%s170] sm:$0xff] %v169
  %s172 = scalar_lea.vmem %s0, 344
  %v173 = vld [vmem:[%s172] sm:$0x3]
  %s174 = scalar_lea.vmem %s1, 326
  %175 = vst [vmem:[%s174] sm:$0x3] %v173
  %s176 = scalar_lea.vmem %s0, 352
  %v177 = vld [vmem:[%s176] sm:$0xff]
  %s178 = scalar_lea.vmem %s1, 328
  %179 = vst [vmem:[%s178] sm:$0xff] %v177
  %s180 = scalar_lea.vmem %s0, 360
  %v181 = vld [vmem:[%s180] sm:$0xff]
  %s182 = scalar_lea.vmem %s1, 336
  %183 = vst [vmem:[%s182] sm:$0xff] %v181
  %s184 = scalar_lea.vmem %s0, 368
  %v185 = vld [vmem:[%s184] sm:$0xff]
  %s186 = scalar_lea.vmem %s1, 344
  %187 = vst [vmem:[%s186] sm:$0xff] %v185
  %s188 = scalar_lea.vmem %s0, 376
  %v189 = vld [vmem:[%s188] sm:$0xff]
  %s190 = scalar_lea.vmem %s1, 352
  %191 = vst [vmem:[%s190] sm:$0xff] %v189
  %s192 = scalar_lea.vmem %s0, 384
  %v193 = vld [vmem:[%s192] sm:$0xff]
  %s194 = scalar_lea.vmem %s1, 360
  %195 = vst [vmem:[%s194] sm:$0xff] %v193
  %s196 = scalar_lea.vmem %s0, 392
  %v197 = vld [vmem:[%s196] sm:$0xff]
  %s198 = scalar_lea.vmem %s1, 368
  %199 = vst [vmem:[%s198] sm:$0xff] %v197
  %s200 = scalar_lea.vmem %s0, 400
  %v201 = vld [vmem:[%s200] sm:$0xff]
  %s202 = scalar_lea.vmem %s1, 376
  %203 = vst [vmem:[%s202] sm:$0xff] %v201
  %s204 = scalar_lea.vmem %s0, 408
  %v205 = vld [vmem:[%s204] sm:$0xff]
  %s206 = scalar_lea.vmem %s1, 384
  %207 = vst [vmem:[%s206] sm:$0xff] %v205
  %s208 = scalar_lea.vmem %s0, 416
  %v209 = vld [vmem:[%s208] sm:$0xff]
  %s210 = scalar_lea.vmem %s1, 392
  %211 = vst [vmem:[%s210] sm:$0xff] %v209
  %s212 = scalar_lea.vmem %s0, 424
  %v213 = vld [vmem:[%s212] sm:$0xff]
  %s214 = scalar_lea.vmem %s1, 400
  %215 = vst [vmem:[%s214] sm:$0xff] %v213
  %s216 = scalar_lea.vmem %s0, 432
  %v217 = vld [vmem:[%s216] sm:$0x3]
  %s218 = scalar_lea.vmem %s1, 408
  %219 = vst [vmem:[%s218] sm:$0x3] %v217
  %s220 = scalar_lea.vmem %s0, 440
  %v221 = vld [vmem:[%s220] sm:$0xff]
  %s222 = scalar_lea.vmem %s1, 410
  %223 = vst [vmem:[%s222] sm:$0xff] %v221
  %s224 = scalar_lea.vmem %s0, 448
  %v225 = vld [vmem:[%s224] sm:$0xff]
  %s226 = scalar_lea.vmem %s1, 418
  %227 = vst [vmem:[%s226] sm:$0xff] %v225
  %s228 = scalar_lea.vmem %s0, 456
  %v229 = vld [vmem:[%s228] sm:$0xff]
  %s230 = scalar_lea.vmem %s1, 426
  %231 = vst [vmem:[%s230] sm:$0xff] %v229
  %s232 = scalar_lea.vmem %s0, 464
  %v233 = vld [vmem:[%s232] sm:$0xff]
  %s234 = scalar_lea.vmem %s1, 434
  %235 = vst [vmem:[%s234] sm:$0xff] %v233
  %s236 = scalar_lea.vmem %s0, 472
  %v237 = vld [vmem:[%s236] sm:$0xff]
  %s238 = scalar_lea.vmem %s1, 442
  %239 = vst [vmem:[%s238] sm:$0xff] %v237
  %s240 = scalar_lea.vmem %s0, 480
  %v241 = vld [vmem:[%s240] sm:$0xff]
  %s242 = scalar_lea.vmem %s1, 450
  %243 = vst [vmem:[%s242] sm:$0xff] %v241
  %s244 = scalar_lea.vmem %s0, 488
  %v245 = vld [vmem:[%s244] sm:$0xff]
  %s246 = scalar_lea.vmem %s1, 458
  %247 = vst [vmem:[%s246] sm:$0xff] %v245
  %s248 = scalar_lea.vmem %s0, 496
  %v249 = vld [vmem:[%s248] sm:$0xff]
  %s250 = scalar_lea.vmem %s1, 466
  %251 = vst [vmem:[%s250] sm:$0xff] %v249
  %s252 = scalar_lea.vmem %s0, 504
  %v253 = vld [vmem:[%s252] sm:$0xff]
  %s254 = scalar_lea.vmem %s1, 474
  %255 = vst [vmem:[%s254] sm:$0xff] %v253
  %s256 = scalar_lea.vmem %s0, 512
  %v257 = vld [vmem:[%s256] sm:$0xff]
  %s258 = scalar_lea.vmem %s1, 482
  %259 = vst [vmem:[%s258] sm:$0xff] %v257
  %s260 = scalar_lea.vmem %s0, 520
  %v261 = vld [vmem:[%s260] sm:$0x3]
  %s262 = scalar_lea.vmem %s1, 490
  %263 = vst [vmem:[%s262] sm:$0x3] %v261
  %s264 = scalar_lea.vmem %s0, 528
  %v265 = vld [vmem:[%s264] sm:$0xff]
  %s266 = scalar_lea.vmem %s1, 492
  %267 = vst [vmem:[%s266] sm:$0xff] %v265
  %s268 = scalar_lea.vmem %s0, 536
  %v269 = vld [vmem:[%s268] sm:$0xff]
  %s270 = scalar_lea.vmem %s1, 500
  %271 = vst [vmem:[%s270] sm:$0xff] %v269
  %s272 = scalar_lea.vmem %s0, 544
  %v273 = vld [vmem:[%s272] sm:$0xff]
  %s274 = scalar_lea.vmem %s1, 508
  %275 = vst [vmem:[%s274] sm:$0xff] %v273
  %s276 = scalar_lea.vmem %s0, 552
  %v277 = vld [vmem:[%s276] sm:$0xff]
  %s278 = scalar_lea.vmem %s1, 516
  %279 = vst [vmem:[%s278] sm:$0xff] %v277
  %s280 = scalar_lea.vmem %s0, 560
  %v281 = vld [vmem:[%s280] sm:$0xff]
  %s282 = scalar_lea.vmem %s1, 524
  %283 = vst [vmem:[%s282] sm:$0xff] %v281
  %s284 = scalar_lea.vmem %s0, 568
  %v285 = vld [vmem:[%s284] sm:$0xff]
  %s286 = scalar_lea.vmem %s1, 532
  %287 = vst [vmem:[%s286] sm:$0xff] %v285
  %s288 = scalar_lea.vmem %s0, 576
  %v289 = vld [vmem:[%s288] sm:$0xff]
  %s290 = scalar_lea.vmem %s1, 540
  %291 = vst [vmem:[%s290] sm:$0xff] %v289
  %s292 = scalar_lea.vmem %s0, 584
  %v293 = vld [vmem:[%s292] sm:$0xff]
  %s294 = scalar_lea.vmem %s1, 548
  %295 = vst [vmem:[%s294] sm:$0xff] %v293
  %s296 = scalar_lea.vmem %s0, 592
  %v297 = vld [vmem:[%s296] sm:$0xff]
  %s298 = scalar_lea.vmem %s1, 556
  %299 = vst [vmem:[%s298] sm:$0xff] %v297
  %s300 = scalar_lea.vmem %s0, 600
  %v301 = vld [vmem:[%s300] sm:$0xff]
  %s302 = scalar_lea.vmem %s1, 564
  %303 = vst [vmem:[%s302] sm:$0xff] %v301
  %s304 = scalar_lea.vmem %s0, 608
  %v305 = vld [vmem:[%s304] sm:$0x3]
  %s306 = scalar_lea.vmem %s1, 572
  %307 = vst [vmem:[%s306] sm:$0x3] %v305
  %s308 = scalar_lea.vmem %s0, 616
  %v309 = vld [vmem:[%s308] sm:$0xff]
  %s310 = scalar_lea.vmem %s1, 574
  %311 = vst [vmem:[%s310] sm:$0xff] %v309
  %s312 = scalar_lea.vmem %s0, 624
  %v313 = vld [vmem:[%s312] sm:$0xff]
  %s314 = scalar_lea.vmem %s1, 582
  %315 = vst [vmem:[%s314] sm:$0xff] %v313
  %s316 = scalar_lea.vmem %s0, 632
  %v317 = vld [vmem:[%s316] sm:$0xff]
  %s318 = scalar_lea.vmem %s1, 590
  %319 = vst [vmem:[%s318] sm:$0xff] %v317
  %s320 = scalar_lea.vmem %s0, 640
  %v321 = vld [vmem:[%s320] sm:$0xff]
  %s322 = scalar_lea.vmem %s1, 598
  %323 = vst [vmem:[%s322] sm:$0xff] %v321
  %s324 = scalar_lea.vmem %s0, 648
  %v325 = vld [vmem:[%s324] sm:$0xff]
  %s326 = scalar_lea.vmem %s1, 606
  %327 = vst [vmem:[%s326] sm:$0xff] %v325
  %s328 = scalar_lea.vmem %s0, 656
  %v329 = vld [vmem:[%s328] sm:$0xff]
  %s330 = scalar_lea.vmem %s1, 614
  %331 = vst [vmem:[%s330] sm:$0xff] %v329
  %s332 = scalar_lea.vmem %s0, 664
  %v333 = vld [vmem:[%s332] sm:$0xff]
  %s334 = scalar_lea.vmem %s1, 622
  %335 = vst [vmem:[%s334] sm:$0xff] %v333
  %s336 = scalar_lea.vmem %s0, 672
  %v337 = vld [vmem:[%s336] sm:$0xff]
  %s338 = scalar_lea.vmem %s1, 630
  %339 = vst [vmem:[%s338] sm:$0xff] %v337
  %s340 = scalar_lea.vmem %s0, 680
  %v341 = vld [vmem:[%s340] sm:$0xff]
  %s342 = scalar_lea.vmem %s1, 638
  %343 = vst [vmem:[%s342] sm:$0xff] %v341
  %s344 = scalar_lea.vmem %s0, 688
  %v345 = vld [vmem:[%s344] sm:$0xff]
  %s346 = scalar_lea.vmem %s1, 646
  %347 = vst [vmem:[%s346] sm:$0xff] %v345
  %s348 = scalar_lea.vmem %s0, 696
  %v349 = vld [vmem:[%s348] sm:$0x3]
  %s350 = scalar_lea.vmem %s1, 654
  %351 = vst [vmem:[%s350] sm:$0x3] %v349

// kernel: vit_patch_embedding.1
$region0: #{vit_patch_embedding.1}
  #allocation0 [shape = 'u32[]', space=smem, size = 0x4, offset = 0x4, fixed_abs, tag = 'smem constant byte address 0x4 - core index']
  #allocation1 [shape = 'u32[72,128]{1,0:T(1,128)}', space=vmem, size = 0x9000, scoped, tag = 'internal scratch']
  %s0 = inlined_call_operand.vmem [shape: f32[656,4], index: 0, kind: input, shape index: {}]
  %s1 = inlined_call_operand.vmem [shape: f32[4,128], index: 1, kind: input, shape index: {}]
  %s2 = inlined_call_operand.vmem [shape: f32[656,128], index: 2, kind: input, shape index: {}]
  %s3 = inlined_call_operand.vmem [shape: f32[656,128], index: 3, kind: output, shape index: {}]
  %s4 = sld [smem:[#allocation0]]
  $region22: #{vit_patch_embedding.1} parent=0
    _
  %s6 = ssub.s32 1, %s4
  %s7 = scalar_select 0, %s6, %s4
  // Predicated region
  $region2: #{vit_patch_embedding.1} parent=0 // pred_check
    _
  $region3: #{vit_patch_embedding.1} parent=0 // pred_check_branch
    %9 = sbr.rel (0) target = $region5
  $region4: #{vit_patch_embedding.1} parent=0 // pred_region
    _
  $region5: #{vit_patch_embedding.1} parent=0 // pred_fallthru
    _
  // Predicated region
  $region6: #{vit_patch_embedding.1} parent=0 // pred_check
    _
  $region7: #{vit_patch_embedding.1} parent=0 // pred_check_branch
    %11 = sbr.rel (0) target = $region9
  $region8: #{vit_patch_embedding.1} parent=0 // pred_region
    _
  $region9: #{vit_patch_embedding.1} parent=0 // pred_fallthru
    _
  // Predicated region
  $region10: #{vit_patch_embedding.1} parent=0 // pred_check
    _
  $region11: #{vit_patch_embedding.1} parent=0 // pred_check_branch
    %13 = sbr.rel (0) target = $region13
  $region12: #{vit_patch_embedding.1} parent=0 // pred_region
    _
  $region13: #{vit_patch_embedding.1} parent=0 // pred_fallthru
    _
  %v14 = vld [vmem:[%s0] sm:$0xff]
  %v15 = vld [vmem:[%s0 + $0x8] sm:$0xff]
  %v16 = vld [vmem:[%s0 + $0x10] sm:$0xff]
  %v17 = vld [vmem:[%s0 + $0x18] sm:$0xff]
  %v18 = vld [vmem:[%s0 + $0x20] sm:$0xff]
  %v19 = vld [vmem:[%s0 + $0x28] sm:$0xff]
  %v20 = vld [vmem:[%s0 + $0x30] sm:$0xff]
  %v21 = vld [vmem:[%s0 + $0x38] sm:$0xff]
  %v22 = vld [vmem:[%s0 + $0x40] sm:$0xff]
  %v23 = vld [vmem:[%s0 + $0x48] sm:$0xff]
  %v24 = vld [vmem:[%s0 + $0x50] sm:$0xff]
  %v25 = vld [vmem:[%s0 + $0x58] sm:$0xff]
  %v26 = vld [vmem:[%s0 + $0x60] sm:$0xff]
  %v27 = vld [vmem:[%s0 + $0x68] sm:$0xff]
  %v28 = vld [vmem:[%s0 + $0x70] sm:$0xff]
  %v29 = vld [vmem:[%s0 + $0x78] sm:$0xff]
  %v30 = vld [vmem:[%s0 + $0x80] sm:$0xff]
  %v31 = vld [vmem:[%s0 + $0x88] sm:$0xff]
  %v32 = vld [vmem:[%s0 + $0x90] sm:$0xff]
  %v33 = vld [vmem:[%s0 + $0x98] sm:$0xff]
  %v34 = vld [vmem:[%s0 + $0xa0] sm:$0xff]
  %v35 = vld [vmem:[%s0 + $0xa8] sm:$0xff]
  %v36 = vld [vmem:[%s0 + $0xb0] sm:$0xff]
  %v37 = vld [vmem:[%s0 + $0xb8] sm:$0xff]
  %v38 = vld [vmem:[%s0 + $0xc0] sm:$0xff]
  %v39 = vld [vmem:[%s0 + $0xc8] sm:$0xff]
  %v40 = vld [vmem:[%s0 + $0xd0] sm:$0xff]
  %v41 = vld [vmem:[%s0 + $0xd8] sm:$0xff]
  %v42 = vld [vmem:[%s0 + $0xe0] sm:$0xff]
  %v43 = vld [vmem:[%s0 + $0xe8] sm:$0xff]
  %v44 = vld [vmem:[%s0 + $0xf0] sm:$0xff]
  %v45 = vld [vmem:[%s0 + $0xf8] sm:$0xff]
  %v46 = vld [vmem:[%s0 + $0x100] sm:$0xff]
  %v47 = vld [vmem:[%s0 + $0x108] sm:$0xff]
  %v48 = vld [vmem:[%s0 + $0x110] sm:$0xff]
  %v49 = vld [vmem:[%s0 + $0x118] sm:$0xff]
  %v50 = vld [vmem:[%s0 + $0x120] sm:$0xff]
  %v51 = vld [vmem:[%s0 + $0x128] sm:$0xff]
  %v52 = vld [vmem:[%s0 + $0x130] sm:$0xff]
  %v53 = vld [vmem:[%s0 + $0x138] sm:$0xff]
  %v54 = vld [vmem:[%s0 + $0x140] sm:$0xff]
  %v55 = vld [vmem:[%s0 + $0x148] sm:$0xff]
  %v56 = vld [vmem:[%s0 + $0x150] sm:$0xff]
  %v57 = vld [vmem:[%s0 + $0x158] sm:$0xff]
  %v58 = vld [vmem:[%s0 + $0x160] sm:$0xff]
  %v59 = vld [vmem:[%s0 + $0x168] sm:$0xff]
  %v60 = vld [vmem:[%s0 + $0x170] sm:$0xff]
  %v61 = vld [vmem:[%s0 + $0x178] sm:$0xff]
  %v62 = vld [vmem:[%s0 + $0x180] sm:$0xff]
  %v63 = vld [vmem:[%s0 + $0x188] sm:$0xff]
  %v64 = vld [vmem:[%s0 + $0x190] sm:$0xff]
  %v65 = vld [vmem:[%s0 + $0x198] sm:$0xff]
  %v66 = vld [vmem:[%s0 + $0x1a0] sm:$0xff]
  %v67 = vld [vmem:[%s0 + $0x1a8] sm:$0xff]
  %v68 = vld [vmem:[%s0 + $0x1b0] sm:$0xff]
  %v69 = vld [vmem:[%s0 + $0x1b8] sm:$0xff]
  %v70 = vld [vmem:[%s0 + $0x1c0] sm:$0xff]
  %v71 = vld [vmem:[%s0 + $0x1c8] sm:$0xff]
  %v72 = vld [vmem:[%s0 + $0x1d0] sm:$0xff]
  %v73 = vld [vmem:[%s0 + $0x1d8] sm:$0xff]
  %v74 = vld [vmem:[%s0 + $0x1e0] sm:$0xff]
  %v75 = vld [vmem:[%s0 + $0x1e8] sm:$0xff]
  %v76 = vld [vmem:[%s0 + $0x1f0] sm:$0xff]
  %v77 = vld [vmem:[%s0 + $0x1f8] sm:$0xff]
  %v78 = vld [vmem:[%s0 + $0x200] sm:$0xff]
  %v79 = vld [vmem:[%s0 + $0x208] sm:$0xff]
  %v80 = vld [vmem:[%s0 + $0x210] sm:$0xff]
  %v81 = vld [vmem:[%s0 + $0x218] sm:$0xff]
  %v82 = vld [vmem:[%s0 + $0x220] sm:$0xff]
  %v83 = vld [vmem:[%s0 + $0x228] sm:$0xff]
  %v84 = vld [vmem:[%s0 + $0x230] sm:$0xff]
  %v85 = vld [vmem:[%s0 + $0x238] sm:$0xff]
  %v86 = vld [vmem:[%s0 + $0x240] sm:$0xff]
  %v87 = vld [vmem:[%s0 + $0x248] sm:$0xff]
  %v88 = vld [vmem:[%s0 + $0x250] sm:$0xff]
  %v89 = vld [vmem:[%s0 + $0x258] sm:$0xff]
  %v90 = vld [vmem:[%s0 + $0x260] sm:$0xff]
  %v91 = vld [vmem:[%s0 + $0x268] sm:$0xff]
  %v92 = vld [vmem:[%s0 + $0x270] sm:$0xff]
  %v93 = vld [vmem:[%s0 + $0x278] sm:$0xff]
  %v94 = vld [vmem:[%s0 + $0x280] sm:$0xff]
  %v95 = vld [vmem:[%s0 + $0x288] sm:$0xff]
  %v96 = vld [vmem:[%s1] sm:$0xf]
  %v97 = vld [vmem:[%s2] sm:$0xff]
  %v98 = vld [vmem:[%s2 + $0x8] sm:$0xff]
  %v99 = vld [vmem:[%s2 + $0x10] sm:$0xff]
  %v100 = vld [vmem:[%s2 + $0x18] sm:$0xff]
  %v101 = vld [vmem:[%s2 + $0x20] sm:$0xff]
  %v102 = vld [vmem:[%s2 + $0x28] sm:$0xff]
  %v103 = vld [vmem:[%s2 + $0x30] sm:$0xff]
  %v104 = vld [vmem:[%s2 + $0x38] sm:$0xff]
  %v105 = vld [vmem:[%s2 + $0x40] sm:$0xff]
  %v106 = vld [vmem:[%s2 + $0x48] sm:$0xff]
  %v107 = vld [vmem:[%s2 + $0x50] sm:$0xff]
  %v108 = vld [vmem:[%s2 + $0x58] sm:$0xff]
  %v109 = vld [vmem:[%s2 + $0x60] sm:$0xff]
  %v110 = vld [vmem:[%s2 + $0x68] sm:$0xff]
  %v111 = vld [vmem:[%s2 + $0x70] sm:$0xff]
  %v112 = vld [vmem:[%s2 + $0x78] sm:$0xff]
  %v113 = vld [vmem:[%s2 + $0x80] sm:$0xff]
  %v114 = vld [vmem:[%s2 + $0x88] sm:$0xff]
  %v115 = vld [vmem:[%s2 + $0x90] sm:$0xff]
  %v116 = vld [vmem:[%s2 + $0x98] sm:$0xff]
  %v117 = vld [vmem:[%s2 + $0xa0] sm:$0xff]
  %v118 = vld [vmem:[%s2 + $0xa8] sm:$0xff]
  %v119 = vld [vmem:[%s2 + $0xb0] sm:$0xff]
  %v120 = vld [vmem:[%s2 + $0xb8] sm:$0xff]
  %v121 = vld [vmem:[%s2 + $0xc0] sm:$0xff]
  %v122 = vld [vmem:[%s2 + $0xc8] sm:$0xff]
  %v123 = vld [vmem:[%s2 + $0xd0] sm:$0xff]
  %v124 = vld [vmem:[%s2 + $0xd8] sm:$0xff]
  %v125 = vld [vmem:[%s2 + $0xe0] sm:$0xff]
  %v126 = vld [vmem:[%s2 + $0xe8] sm:$0xff]
  %v127 = vld [vmem:[%s2 + $0xf0] sm:$0xff]
  %v128 = vld [vmem:[%s2 + $0xf8] sm:$0xff]
  %v129 = vld [vmem:[%s2 + $0x100] sm:$0xff]
  %v130 = vld [vmem:[%s2 + $0x108] sm:$0xff]
  %v131 = vld [vmem:[%s2 + $0x110] sm:$0xff]
  %v132 = vld [vmem:[%s2 + $0x118] sm:$0xff]
  %v133 = vld [vmem:[%s2 + $0x120] sm:$0xff]
  %v134 = vld [vmem:[%s2 + $0x128] sm:$0xff]
  %v135 = vld [vmem:[%s2 + $0x130] sm:$0xff]
  %v136 = vld [vmem:[%s2 + $0x138] sm:$0xff]
  %v137 = vld [vmem:[%s2 + $0x140] sm:$0xff]
  %v138 = vld [vmem:[%s2 + $0x148] sm:$0xff]
  %v139 = vld [vmem:[%s2 + $0x150] sm:$0xff]
  %v140 = vld [vmem:[%s2 + $0x158] sm:$0xff]
  %v141 = vld [vmem:[%s2 + $0x160] sm:$0xff]
  %v142 = vld [vmem:[%s2 + $0x168] sm:$0xff]
  %v143 = vld [vmem:[%s2 + $0x170] sm:$0xff]
  %v144 = vld [vmem:[%s2 + $0x178] sm:$0xff]
  %v145 = vld [vmem:[%s2 + $0x180] sm:$0xff]
  %v146 = vld [vmem:[%s2 + $0x188] sm:$0xff]
  %v147 = vld [vmem:[%s2 + $0x190] sm:$0xff]
  %v148 = vld [vmem:[%s2 + $0x198] sm:$0xff]
  %v149 = vld [vmem:[%s2 + $0x1a0] sm:$0xff]
  %v150 = vld [vmem:[%s2 + $0x1a8] sm:$0xff]
  %v151 = vld [vmem:[%s2 + $0x1b0] sm:$0xff]
  %v152 = vld [vmem:[%s2 + $0x1b8] sm:$0xff]
  %v153 = vld [vmem:[%s2 + $0x1c0] sm:$0xff]
  %v154 = vld [vmem:[%s2 + $0x1c8] sm:$0xff]
  %v155 = vld [vmem:[%s2 + $0x1d0] sm:$0xff]
  %v156 = vld [vmem:[%s2 + $0x1d8] sm:$0xff]
  %v157 = vld [vmem:[%s2 + $0x1e0] sm:$0xff]
  %v158 = vld [vmem:[%s2 + $0x1e8] sm:$0xff]
  %v159 = vld [vmem:[%s2 + $0x1f0] sm:$0xff]
  %v160 = vld [vmem:[%s2 + $0x1f8] sm:$0xff]
  %v161 = vld [vmem:[%s2 + $0x200] sm:$0xff]
  %v162 = vld [vmem:[%s2 + $0x208] sm:$0xff]
  %v163 = vld [vmem:[%s2 + $0x210] sm:$0xff]
  %v164 = vld [vmem:[%s2 + $0x218] sm:$0xff]
  %v165 = vld [vmem:[%s2 + $0x220] sm:$0xff]
  %v166 = vld [vmem:[%s2 + $0x228] sm:$0xff]
  %v167 = vld [vmem:[%s2 + $0x230] sm:$0xff]
  %v168 = vld [vmem:[%s2 + $0x238] sm:$0xff]
  %v169 = vld [vmem:[%s2 + $0x240] sm:$0xff]
  %v170 = vld [vmem:[%s2 + $0x248] sm:$0xff]
  %v171 = vld [vmem:[%s2 + $0x250] sm:$0xff]
  %v172 = vld [vmem:[%s2 + $0x258] sm:$0xff]
  %v173 = vld [vmem:[%s2 + $0x260] sm:$0xff]
  %v174 = vld [vmem:[%s2 + $0x268] sm:$0xff]
  %v175 = vld [vmem:[%s2 + $0x270] sm:$0xff]
  %v176 = vld [vmem:[%s2 + $0x278] sm:$0xff]
  %v177 = vld [vmem:[%s2 + $0x280] sm:$0xff]
  %v178 = vld [vmem:[%s2 + $0x288] sm:$0xff]
  %vm179 = vcmask 31744
  %v181 = vsel %vm179, %v14, 0
  %v184 = vsel %vm179, %v15, 0
  %v187 = vsel %vm179, %v16, 0
  %v190 = vsel %vm179, %v17, 0
  %v193 = vsel %vm179, %v18, 0
  %v196 = vsel %vm179, %v19, 0
  %v199 = vsel %vm179, %v20, 0
  %v202 = vsel %vm179, %v21, 0
  %v205 = vsel %vm179, %v22, 0
  %v208 = vsel %vm179, %v23, 0
  %v211 = vsel %vm179, %v24, 0
  %v214 = vsel %vm179, %v25, 0
  %v217 = vsel %vm179, %v26, 0
  %v220 = vsel %vm179, %v27, 0
  %v223 = vsel %vm179, %v28, 0
  %v226 = vsel %vm179, %v29, 0
  %v229 = vsel %vm179, %v30, 0
  %v232 = vsel %vm179, %v31, 0
  %v235 = vsel %vm179, %v32, 0
  %v238 = vsel %vm179, %v33, 0
  %v241 = vsel %vm179, %v34, 0
  %v244 = vsel %vm179, %v35, 0
  %v247 = vsel %vm179, %v36, 0
  %v250 = vsel %vm179, %v37, 0
  %v253 = vsel %vm179, %v38, 0
  %v256 = vsel %vm179, %v39, 0
  %v259 = vsel %vm179, %v40, 0
  %v262 = vsel %vm179, %v41, 0
  %v265 = vsel %vm179, %v42, 0
  %v268 = vsel %vm179, %v43, 0
  %v271 = vsel %vm179, %v44, 0
  %v274 = vsel %vm179, %v45, 0
  %v277 = vsel %vm179, %v46, 0
  %v280 = vsel %vm179, %v47, 0
  %v283 = vsel %vm179, %v48, 0
  %v286 = vsel %vm179, %v49, 0
  %v289 = vsel %vm179, %v50, 0
  %v292 = vsel %vm179, %v51, 0
  %v295 = vsel %vm179, %v52, 0
  %v298 = vsel %vm179, %v53, 0
  %v301 = vsel %vm179, %v54, 0
  %v304 = vsel %vm179, %v55, 0
  %v307 = vsel %vm179, %v56, 0
  %v310 = vsel %vm179, %v57, 0
  %v313 = vsel %vm179, %v58, 0
  %v316 = vsel %vm179, %v59, 0
  %v319 = vsel %vm179, %v60, 0
  %v322 = vsel %vm179, %v61, 0
  %v325 = vsel %vm179, %v62, 0
  %v328 = vsel %vm179, %v63, 0
  %v331 = vsel %vm179, %v64, 0
  %v334 = vsel %vm179, %v65, 0
  %v337 = vsel %vm179, %v66, 0
  %v340 = vsel %vm179, %v67, 0
  %v343 = vsel %vm179, %v68, 0
  %v346 = vsel %vm179, %v69, 0
  %v349 = vsel %vm179, %v70, 0
  %v352 = vsel %vm179, %v71, 0
  %v355 = vsel %vm179, %v72, 0
  %v358 = vsel %vm179, %v73, 0
  %v361 = vsel %vm179, %v74, 0
  %v364 = vsel %vm179, %v75, 0
  %v367 = vsel %vm179, %v76, 0
  %v370 = vsel %vm179, %v77, 0
  %v373 = vsel %vm179, %v78, 0
  %v376 = vsel %vm179, %v79, 0
  %v379 = vsel %vm179, %v80, 0
  %v382 = vsel %vm179, %v81, 0
  %v385 = vsel %vm179, %v82, 0
  %v388 = vsel %vm179, %v83, 0
  %v391 = vsel %vm179, %v84, 0
  %v394 = vsel %vm179, %v85, 0
  %v397 = vsel %vm179, %v86, 0
  %v400 = vsel %vm179, %v87, 0
  %v403 = vsel %vm179, %v88, 0
  %v406 = vsel %vm179, %v89, 0
  %v409 = vsel %vm179, %v90, 0
  %v412 = vsel %vm179, %v91, 0
  %v415 = vsel %vm179, %v92, 0
  %v418 = vsel %vm179, %v93, 0
  %v421 = vsel %vm179, %v94, 0
  %v424 = vsel %vm179, %v95, 0
  %vm426 = vcmask 1043456
  %v428 = vsel %vm426, %v96, 0
  %430 = vmatpush.msra.mxu0 0.0
  %431 = vmatpush.msra.mxu0 0.0
  %432 = vmatpush.msra.mxu0 0.0
  %433 = vmatpush.msra.mxu0 0.0
  %434 = vmatpush.msra.mxu0 0.0
  %435 = vmatpush.msra.mxu0 0.0
  %436 = vmatpush.msra.mxu0 0.0
  %437 = vmatpush.msra.mxu0 0.0
  %438 = vmatpush.msra.mxu0 0.0
  %439 = vmatpush.msra.mxu0 0.0
  %440 = vmatpush.msra.mxu0 0.0
  %441 = vmatpush.msra.mxu0 0.0
  %442 = vmatpush.msra.mxu0 0.0
  %443 = vmatpush.msra.mxu0 0.0
  %444 = vmatpush.msra.mxu0 0.0
  %445 = vmatpush.msra.mxu0 %v428
  %446 = vmatmul.f32.gmra.mxu0 %v181
  %v447 = vpop.f32.mrf.mxu0
  %v448 = vadd.f32 %v97, %v447
  %449 = vmatmul.f32.gmra.mxu0 %v184
  %v450 = vpop.f32.mrf.mxu0
  %v451 = vadd.f32 %v98, %v450
  %452 = vmatmul.f32.gmra.mxu0 %v187
  %v453 = vpop.f32.mrf.mxu0
  %v454 = vadd.f32 %v99, %v453
  %455 = vmatmul.f32.gmra.mxu0 %v190
  %v456 = vpop.f32.mrf.mxu0
  %v457 = vadd.f32 %v100, %v456
  %458 = vmatmul.f32.gmra.mxu0 %v193
  %v459 = vpop.f32.mrf.mxu0
  %v460 = vadd.f32 %v101, %v459
  %461 = vmatmul.f32.gmra.mxu0 %v196
  %v462 = vpop.f32.mrf.mxu0
  %v463 = vadd.f32 %v102, %v462
  %464 = vmatmul.f32.gmra.mxu0 %v199
  %v465 = vpop.f32.mrf.mxu0
  %v466 = vadd.f32 %v103, %v465
  %467 = vmatmul.f32.gmra.mxu0 %v202
  %v468 = vpop.f32.mrf.mxu0
  %v469 = vadd.f32 %v104, %v468
  %470 = vmatmul.f32.gmra.mxu0 %v205
  %v471 = vpop.f32.mrf.mxu0
  %v472 = vadd.f32 %v105, %v471
  %473 = vmatmul.f32.gmra.mxu0 %v208
  %v474 = vpop.f32.mrf.mxu0
  %v475 = vadd.f32 %v106, %v474
  %476 = vmatmul.f32.gmra.mxu0 %v211
  %v477 = vpop.f32.mrf.mxu0
  %v478 = vadd.f32 %v107, %v477
  %479 = vmatmul.f32.gmra.mxu0 %v214
  %v480 = vpop.f32.mrf.mxu0
  %v481 = vadd.f32 %v108, %v480
  %482 = vmatmul.f32.gmra.mxu0 %v217
  %v483 = vpop.f32.mrf.mxu0
  %v484 = vadd.f32 %v109, %v483
  %485 = vmatmul.f32.gmra.mxu0 %v220
  %v486 = vpop.f32.mrf.mxu0
  %v487 = vadd.f32 %v110, %v486
  %488 = vmatmul.f32.gmra.mxu0 %v223
  %v489 = vpop.f32.mrf.mxu0
  %v490 = vadd.f32 %v111, %v489
  %491 = vmatmul.f32.gmra.mxu0 %v226
  %v492 = vpop.f32.mrf.mxu0
  %v493 = vadd.f32 %v112, %v492
  %494 = vmatmul.f32.gmra.mxu0 %v229
  %v495 = vpop.f32.mrf.mxu0
  %v496 = vadd.f32 %v113, %v495
  %497 = vmatmul.f32.gmra.mxu0 %v232
  %v498 = vpop.f32.mrf.mxu0
  %v499 = vadd.f32 %v114, %v498
  %500 = vmatmul.f32.gmra.mxu0 %v235
  %v501 = vpop.f32.mrf.mxu0
  %v502 = vadd.f32 %v115, %v501
  %503 = vmatmul.f32.gmra.mxu0 %v238
  %v504 = vpop.f32.mrf.mxu0
  %v505 = vadd.f32 %v116, %v504
  %506 = vmatmul.f32.gmra.mxu0 %v241
  %v507 = vpop.f32.mrf.mxu0
  %v508 = vadd.f32 %v117, %v507
  %509 = vmatmul.f32.gmra.mxu0 %v244
  %v510 = vpop.f32.mrf.mxu0
  %v511 = vadd.f32 %v118, %v510
  %512 = vmatmul.f32.gmra.mxu0 %v247
  %v513 = vpop.f32.mrf.mxu0
  %v514 = vadd.f32 %v119, %v513
  %515 = vmatmul.f32.gmra.mxu0 %v250
  %v516 = vpop.f32.mrf.mxu0
  %v517 = vadd.f32 %v120, %v516
  %518 = vmatmul.f32.gmra.mxu0 %v253
  %v519 = vpop.f32.mrf.mxu0
  %v520 = vadd.f32 %v121, %v519
  %521 = vmatmul.f32.gmra.mxu0 %v256
  %v522 = vpop.f32.mrf.mxu0
  %v523 = vadd.f32 %v122, %v522
  %524 = vmatmul.f32.gmra.mxu0 %v259
  %v525 = vpop.f32.mrf.mxu0
  %v526 = vadd.f32 %v123, %v525
  %527 = vmatmul.f32.gmra.mxu0 %v262
  %v528 = vpop.f32.mrf.mxu0
  %v529 = vadd.f32 %v124, %v528
  %530 = vmatmul.f32.gmra.mxu0 %v265
  %v531 = vpop.f32.mrf.mxu0
  %v532 = vadd.f32 %v125, %v531
  %533 = vmatmul.f32.gmra.mxu0 %v268
  %v534 = vpop.f32.mrf.mxu0
  %v535 = vadd.f32 %v126, %v534
  %536 = vmatmul.f32.gmra.mxu0 %v271
  %v537 = vpop.f32.mrf.mxu0
  %v538 = vadd.f32 %v127, %v537
  %539 = vmatmul.f32.gmra.mxu0 %v274
  %v540 = vpop.f32.mrf.mxu0
  %v541 = vadd.f32 %v128, %v540
  %542 = vmatmul.f32.gmra.mxu0 %v277
  %v543 = vpop.f32.mrf.mxu0
  %v544 = vadd.f32 %v129, %v543
  %545 = vmatmul.f32.gmra.mxu0 %v280
  %v546 = vpop.f32.mrf.mxu0
  %v547 = vadd.f32 %v130, %v546
  %548 = vmatmul.f32.gmra.mxu0 %v283
  %v549 = vpop.f32.mrf.mxu0
  %v550 = vadd.f32 %v131, %v549
  %551 = vmatmul.f32.gmra.mxu0 %v286
  %v552 = vpop.f32.mrf.mxu0
  %v553 = vadd.f32 %v132, %v552
  %554 = vmatmul.f32.gmra.mxu0 %v289
  %v555 = vpop.f32.mrf.mxu0
  %v556 = vadd.f32 %v133, %v555
  %557 = vmatmul.f32.gmra.mxu0 %v292
  %v558 = vpop.f32.mrf.mxu0
  %v559 = vadd.f32 %v134, %v558
  %560 = vmatmul.f32.gmra.mxu0 %v295
  %v561 = vpop.f32.mrf.mxu0
  %v562 = vadd.f32 %v135, %v561
  %563 = vmatmul.f32.gmra.mxu0 %v298
  %v564 = vpop.f32.mrf.mxu0
  %v565 = vadd.f32 %v136, %v564
  %566 = vmatmul.f32.gmra.mxu0 %v301
  %v567 = vpop.f32.mrf.mxu0
  %v568 = vadd.f32 %v137, %v567
  %569 = vmatmul.f32.gmra.mxu0 %v304
  %v570 = vpop.f32.mrf.mxu0
  %v571 = vadd.f32 %v138, %v570
  %572 = vmatmul.f32.gmra.mxu0 %v307
  %v573 = vpop.f32.mrf.mxu0
  %v574 = vadd.f32 %v139, %v573
  %575 = vmatmul.f32.gmra.mxu0 %v310
  %v576 = vpop.f32.mrf.mxu0
  %v577 = vadd.f32 %v140, %v576
  %578 = vmatmul.f32.gmra.mxu0 %v313
  %v579 = vpop.f32.mrf.mxu0
  %v580 = vadd.f32 %v141, %v579
  %581 = vmatmul.f32.gmra.mxu0 %v316
  %v582 = vpop.f32.mrf.mxu0
  %v583 = vadd.f32 %v142, %v582
  %584 = vmatmul.f32.gmra.mxu0 %v319
  %v585 = vpop.f32.mrf.mxu0
  %v586 = vadd.f32 %v143, %v585
  %587 = vmatmul.f32.gmra.mxu0 %v322
  %v588 = vpop.f32.mrf.mxu0
  %v589 = vadd.f32 %v144, %v588
  %590 = vmatmul.f32.gmra.mxu0 %v325
  %v591 = vpop.f32.mrf.mxu0
  %v592 = vadd.f32 %v145, %v591
  %593 = vmatmul.f32.gmra.mxu0 %v328
  %v594 = vpop.f32.mrf.mxu0
  %v595 = vadd.f32 %v146, %v594
  %596 = vmatmul.f32.gmra.mxu0 %v331
  %v597 = vpop.f32.mrf.mxu0
  %v598 = vadd.f32 %v147, %v597
  %599 = vmatmul.f32.gmra.mxu0 %v334
  %v600 = vpop.f32.mrf.mxu0
  %v601 = vadd.f32 %v148, %v600
  %602 = vmatmul.f32.gmra.mxu0 %v337
  %v603 = vpop.f32.mrf.mxu0
  %v604 = vadd.f32 %v149, %v603
  %605 = vmatmul.f32.gmra.mxu0 %v340
  %v606 = vpop.f32.mrf.mxu0
  %v607 = vadd.f32 %v150, %v606
  %608 = vmatmul.f32.gmra.mxu0 %v343
  %v609 = vpop.f32.mrf.mxu0
  %v610 = vadd.f32 %v151, %v609
  %611 = vmatmul.f32.gmra.mxu0 %v346
  %v612 = vpop.f32.mrf.mxu0
  %v613 = vadd.f32 %v152, %v612
  %614 = vmatmul.f32.gmra.mxu0 %v349
  %v615 = vpop.f32.mrf.mxu0
  %v616 = vadd.f32 %v153, %v615
  %617 = vmatmul.f32.gmra.mxu0 %v352
  %v618 = vpop.f32.mrf.mxu0
  %v619 = vadd.f32 %v154, %v618
  %620 = vmatmul.f32.gmra.mxu0 %v355
  %v621 = vpop.f32.mrf.mxu0
  %v622 = vadd.f32 %v155, %v621
  %623 = vmatmul.f32.gmra.mxu0 %v358
  %v624 = vpop.f32.mrf.mxu0
  %v625 = vadd.f32 %v156, %v624
  %626 = vmatmul.f32.gmra.mxu0 %v361
  %v627 = vpop.f32.mrf.mxu0
  %v628 = vadd.f32 %v157, %v627
  %629 = vmatmul.f32.gmra.mxu0 %v364
  %v630 = vpop.f32.mrf.mxu0
  %v631 = vadd.f32 %v158, %v630
  %632 = vmatmul.f32.gmra.mxu0 %v367
  %v633 = vpop.f32.mrf.mxu0
  %v634 = vadd.f32 %v159, %v633
  %635 = vmatmul.f32.gmra.mxu0 %v370
  %v636 = vpop.f32.mrf.mxu0
  %v637 = vadd.f32 %v160, %v636
  %638 = vmatmul.f32.gmra.mxu0 %v373
  %v639 = vpop.f32.mrf.mxu0
  %v640 = vadd.f32 %v161, %v639
  %641 = vmatmul.f32.gmra.mxu0 %v376
  %v642 = vpop.f32.mrf.mxu0
  %v643 = vadd.f32 %v162, %v642
  %644 = vmatmul.f32.gmra.mxu0 %v379
  %v645 = vpop.f32.mrf.mxu0
  %v646 = vadd.f32 %v163, %v645
  %647 = vmatmul.f32.gmra.mxu0 %v382
  %v648 = vpop.f32.mrf.mxu0
  %v649 = vadd.f32 %v164, %v648
  %650 = vmatmul.f32.gmra.mxu0 %v385
  %v651 = vpop.f32.mrf.mxu0
  %v652 = vadd.f32 %v165, %v651
  %653 = vmatmul.f32.gmra.mxu0 %v388
  %v654 = vpop.f32.mrf.mxu0
  %v655 = vadd.f32 %v166, %v654
  %656 = vmatmul.f32.gmra.mxu0 %v391
  %v657 = vpop.f32.mrf.mxu0
  %v658 = vadd.f32 %v167, %v657
  %659 = vmatmul.f32.gmra.mxu0 %v394
  %v660 = vpop.f32.mrf.mxu0
  %v661 = vadd.f32 %v168, %v660
  %662 = vmatmul.f32.gmra.mxu0 %v397
  %v663 = vpop.f32.mrf.mxu0
  %v664 = vadd.f32 %v169, %v663
  %665 = vmatmul.f32.gmra.mxu0 %v400
  %v666 = vpop.f32.mrf.mxu0
  %v667 = vadd.f32 %v170, %v666
  %668 = vmatmul.f32.gmra.mxu0 %v403
  %v669 = vpop.f32.mrf.mxu0
  %v670 = vadd.f32 %v171, %v669
  %671 = vmatmul.f32.gmra.mxu0 %v406
  %v672 = vpop.f32.mrf.mxu0
  %v673 = vadd.f32 %v172, %v672
  %674 = vmatmul.f32.gmra.mxu0 %v409
  %v675 = vpop.f32.mrf.mxu0
  %v676 = vadd.f32 %v173, %v675
  %677 = vmatmul.f32.gmra.mxu0 %v412
  %v678 = vpop.f32.mrf.mxu0
  %v679 = vadd.f32 %v174, %v678
  %680 = vmatmul.f32.gmra.mxu0 %v415
  %v681 = vpop.f32.mrf.mxu0
  %v682 = vadd.f32 %v175, %v681
  %683 = vmatmul.f32.gmra.mxu0 %v418
  %v684 = vpop.f32.mrf.mxu0
  %v685 = vadd.f32 %v176, %v684
  %686 = vmatmul.f32.gmra.mxu0 %v421
  %v687 = vpop.f32.mrf.mxu0
  %v688 = vadd.f32 %v177, %v687
  %689 = vmatmul.f32.gmra.mxu0 %v424
  %v690 = vpop.f32.mrf.mxu0
  %v691 = vadd.f32 %v178, %v690
  %692 = vdwg.mxu0
  %693 = vst [vmem:[%s3] sm:$0xff] %v448
  %694 = vst [vmem:[%s3 + $0x8] sm:$0xff] %v451
  %695 = vst [vmem:[%s3 + $0x10] sm:$0xff] %v454
  %696 = vst [vmem:[%s3 + $0x18] sm:$0xff] %v457
  %697 = vst [vmem:[%s3 + $0x20] sm:$0xff] %v460
  %698 = vst [vmem:[%s3 + $0x28] sm:$0xff] %v463
  %699 = vst [vmem:[%s3 + $0x30] sm:$0xff] %v466
  %700 = vst [vmem:[%s3 + $0x38] sm:$0xff] %v469
  %701 = vst [vmem:[%s3 + $0x40] sm:$0xff] %v472
  %702 = vst [vmem:[%s3 + $0x48] sm:$0xff] %v475
  %703 = vst [vmem:[%s3 + $0x50] sm:$0xff] %v478
  %704 = vst [vmem:[%s3 + $0x58] sm:$0xff] %v481
  %705 = vst [vmem:[%s3 + $0x60] sm:$0xff] %v484
  %706 = vst [vmem:[%s3 + $0x68] sm:$0xff] %v487
  %707 = vst [vmem:[%s3 + $0x70] sm:$0xff] %v490
  %708 = vst [vmem:[%s3 + $0x78] sm:$0xff] %v493
  %709 = vst [vmem:[%s3 + $0x80] sm:$0xff] %v496
  %710 = vst [vmem:[%s3 + $0x88] sm:$0xff] %v499
  %711 = vst [vmem:[%s3 + $0x90] sm:$0xff] %v502
  %712 = vst [vmem:[%s3 + $0x98] sm:$0xff] %v505
  %713 = vst [vmem:[%s3 + $0xa0] sm:$0xff] %v508
  %714 = vst [vmem:[%s3 + $0xa8] sm:$0xff] %v511
  %715 = vst [vmem:[%s3 + $0xb0] sm:$0xff] %v514
  %716 = vst [vmem:[%s3 + $0xb8] sm:$0xff] %v517
  %717 = vst [vmem:[%s3 + $0xc0] sm:$0xff] %v520
  %718 = vst [vmem:[%s3 + $0xc8] sm:$0xff] %v523
  %719 = vst [vmem:[%s3 + $0xd0] sm:$0xff] %v526
  %720 = vst [vmem:[%s3 + $0xd8] sm:$0xff] %v529
  %721 = vst [vmem:[%s3 + $0xe0] sm:$0xff] %v532
  %722 = vst [vmem:[%s3 + $0xe8] sm:$0xff] %v535
  %723 = vst [vmem:[%s3 + $0xf0] sm:$0xff] %v538
  %724 = vst [vmem:[%s3 + $0xf8] sm:$0xff] %v541
  %725 = vst [vmem:[%s3 + $0x100] sm:$0xff] %v544
  %726 = vst [vmem:[%s3 + $0x108] sm:$0xff] %v547
  %727 = vst [vmem:[%s3 + $0x110] sm:$0xff] %v550
  %728 = vst [vmem:[%s3 + $0x118] sm:$0xff] %v553
  %729 = vst [vmem:[%s3 + $0x120] sm:$0xff] %v556
  %730 = vst [vmem:[%s3 + $0x128] sm:$0xff] %v559
  %731 = vst [vmem:[%s3 + $0x130] sm:$0xff] %v562
  %732 = vst [vmem:[%s3 + $0x138] sm:$0xff] %v565
  %733 = vst [vmem:[%s3 + $0x140] sm:$0xff] %v568
  %734 = vst [vmem:[%s3 + $0x148] sm:$0xff] %v571
  %735 = vst [vmem:[%s3 + $0x150] sm:$0xff] %v574
  %736 = vst [vmem:[%s3 + $0x158] sm:$0xff] %v577
  %737 = vst [vmem:[%s3 + $0x160] sm:$0xff] %v580
  %738 = vst [vmem:[%s3 + $0x168] sm:$0xff] %v583
  %739 = vst [vmem:[%s3 + $0x170] sm:$0xff] %v586
  %740 = vst [vmem:[%s3 + $0x178] sm:$0xff] %v589
  %741 = vst [vmem:[%s3 + $0x180] sm:$0xff] %v592
  %742 = vst [vmem:[%s3 + $0x188] sm:$0xff] %v595
  %743 = vst [vmem:[%s3 + $0x190] sm:$0xff] %v598
  %744 = vst [vmem:[%s3 + $0x198] sm:$0xff] %v601
  %745 = vst [vmem:[%s3 + $0x1a0] sm:$0xff] %v604
  %746 = vst [vmem:[%s3 + $0x1a8] sm:$0xff] %v607
  %747 = vst [vmem:[%s3 + $0x1b0] sm:$0xff] %v610
  %748 = vst [vmem:[%s3 + $0x1b8] sm:$0xff] %v613
  %749 = vst [vmem:[%s3 + $0x1c0] sm:$0xff] %v616
  %750 = vst [vmem:[%s3 + $0x1c8] sm:$0xff] %v619
  %751 = vst [vmem:[%s3 + $0x1d0] sm:$0xff] %v622
  %752 = vst [vmem:[%s3 + $0x1d8] sm:$0xff] %v625
  %753 = vst [vmem:[%s3 + $0x1e0] sm:$0xff] %v628
  %754 = vst [vmem:[%s3 + $0x1e8] sm:$0xff] %v631
  %755 = vst [vmem:[%s3 + $0x1f0] sm:$0xff] %v634
  %756 = vst [vmem:[%s3 + $0x1f8] sm:$0xff] %v637
  %757 = vst [vmem:[%s3 + $0x200] sm:$0xff] %v640
  %758 = vst [vmem:[%s3 + $0x208] sm:$0xff] %v643
  %759 = vst [vmem:[%s3 + $0x210] sm:$0xff] %v646
  %760 = vst [vmem:[%s3 + $0x218] sm:$0xff] %v649
  %761 = vst [vmem:[%s3 + $0x220] sm:$0xff] %v652
  %762 = vst [vmem:[%s3 + $0x228] sm:$0xff] %v655
  %763 = vst [vmem:[%s3 + $0x230] sm:$0xff] %v658
  %764 = vst [vmem:[%s3 + $0x238] sm:$0xff] %v661
  %765 = vst [vmem:[%s3 + $0x240] sm:$0xff] %v664
  %766 = vst [vmem:[%s3 + $0x248] sm:$0xff] %v667
  %767 = vst [vmem:[%s3 + $0x250] sm:$0xff] %v670
  %768 = vst [vmem:[%s3 + $0x258] sm:$0xff] %v673
  %769 = vst [vmem:[%s3 + $0x260] sm:$0xff] %v676
  %770 = vst [vmem:[%s3 + $0x268] sm:$0xff] %v679
  %771 = vst [vmem:[%s3 + $0x270] sm:$0xff] %v682
  %772 = vst [vmem:[%s3 + $0x278] sm:$0xff] %v685
  %773 = vst [vmem:[%s3 + $0x280] sm:$0xff] %v688
  %774 = vst [vmem:[%s3 + $0x288] sm:$0xff] %v691
  // Predicated region
  $region14: #{vit_patch_embedding.1} parent=0 // pred_check
    _
  $region15: #{vit_patch_embedding.1} parent=0 // pred_check_branch
    %776 = sbr.rel (0) target = $region17
  $region16: #{vit_patch_embedding.1} parent=0 // pred_region
    _
  $region17: #{vit_patch_embedding.1} parent=0 // pred_fallthru
    _
  // Predicated region
  $region18: #{vit_patch_embedding.1} parent=0 // pred_check
    _
  $region19: #{vit_patch_embedding.1} parent=0 // pred_check_branch
    %778 = sbr.rel (0) target = $region21
  $region20: #{vit_patch_embedding.1} parent=0 // pred_region
    _
  $region21: #{vit_patch_embedding.1} parent=0 // pred_fallthru
    _

</llo_original>
